<compile_context>
chip_gen: v7x
topology: tpu7x:2x2x1
jax: 0.10.0
libtpu: 0.0.40
codegen_flags: <defaults>
</compile_context>

<pallas_src>
import functools

import jax
import jax.numpy as jnp
from jax.experimental import pallas as pl
from jax.experimental.pallas import tpu as pltpu


DIM = 3     # point dimensionality (PyTorch default dim=3)
C_PAD = 8   # padded input-channel count (lane/minor dim of the x block)


def _round_up(x, m):
    return (x + m - 1) // m * m


# ----------------------------------------------------------------------------
# Pallas kernel: feature MLP + global max over points, tiled along N.
# ----------------------------------------------------------------------------
def _feature_kernel(x_ref, w1_ref, b1_ref, w2_ref, b2_ref, w3_ref, b3_ref,
                    g_ref, acc_ref, *, n_valid, n_pad, tile_n):
    """Grid = (batch, n_tile).

    x_ref  : (1, tile_n, C_PAD) bf16   points for this (batch, tile)
    g_ref  : (1, 1, 1024) f32          per-batch global max feature
    acc_ref: (1, 1024) f32             running max (of raw layer-3 output)
    """
    nt = pl.program_id(1)

    @pl.when(nt == 0)
    def _init():
        acc_ref[...] = jnp.full_like(acc_ref, -jnp.inf)

    x = x_ref[0]                                                  # (tile_n, C_PAD)

    # Conv1d(k=1)+BN(folded)+ReLU == per-point matmul; bf16 MXU, f32 accumulate.
    h = jnp.dot(x, w1_ref[...], preferred_element_type=jnp.float32) + b1_ref[...]
    h = jnp.maximum(h, 0.0)
    h = jnp.dot(h.astype(jnp.bfloat16), w2_ref[...],
                preferred_element_type=jnp.float32) + b2_ref[...]
    h = jnp.maximum(h, 0.0)

    # Layer-3 bias + ReLU are hoisted into the finalize block (they commute
    # with the per-column max), so the hot path touches the (tile_n, 1024)
    # activation only for the (optional) select and the max tree.
    s = jnp.dot(h.astype(jnp.bfloat16), w3_ref[...],
                preferred_element_type=jnp.float32)               # (tile_n, 1024)

    if n_pad != n_valid:   # static: mask padded points only when they exist
        row = jax.lax.broadcasted_iota(jnp.int32, (tile_n, 1), 0)  # (tile_n, 1)
        valid = row < (n_valid - nt * tile_n)
        s = jnp.where(valid, s, -jnp.inf)                          # broadcast mask

    # Running max over point tiles  ==  torch.max(x, dim=2) (pre-bias/ReLU).
    acc_ref[...] = jnp.maximum(acc_ref[...], jnp.max(s, axis=0, keepdims=True))

    @pl.when(nt == pl.num_programs(1) - 1)
    def _finalize():
        # relu(max_n(s) + b3) == max_n(relu(s + b3)); applied once per batch.
        g_ref[0] = jnp.maximum(acc_ref[...] + b3_ref[...], 0.0)


def _const_spec(shape):
    # Whole-array block with a constant index map: Pallas fetches it once and
    # keeps it resident across the grid (~0.3 MB total of feature weights).
    nd = len(shape)
    return pl.BlockSpec(shape, lambda b, nt, _nd=nd: (0,) * _nd)


@functools.partial(jax.jit, static_argnames=("dim", "tile_n"))
def point_spatial_transformer(x_ncl, params, dim=DIM, tile_n=2048):
    """x_ncl: (B, dim, N) float32 — same layout as the PyTorch module input."""
    B, C, N = x_ncl.shape
    assert C == dim
    assert tile_n % 16 == 0, "tile_n must be a multiple of 16 (bf16 sublanes)"

    (w1, b1, w2, b2, w3, b3, w4, b4, w5, b5, w6, b6) = params
    c_feat = w3.shape[1]                                          # 1024

    # Point-axis tiling: small N collapses to a single full-extent tile,
    # ragged N is padded and masked inside the kernel.
    tn = tile_n if N >= tile_n else _round_up(N, 16)
    n_pad = _round_up(N, tn)

    # Layout glue: (B, C, N) -> (B, N_pad, C_PAD) bf16 (fuses into one XLA pass).
    x_bnc = jnp.transpose(x_ncl, (0, 2, 1)).astype(jnp.bfloat16)
    x_bnc = jnp.pad(x_bnc, ((0, 0), (0, n_pad - N), (0, C_PAD - dim)))

    in_specs = [
        pl.BlockSpec((1, tn, C_PAD), lambda b, nt: (b, nt, 0)),   # x tiles
        _const_spec(w1.shape), _const_spec(b1.shape),
        _const_spec(w2.shape), _const_spec(b2.shape),
        _const_spec(w3.shape), _const_spec(b3.shape),
    ]

    flops = 2 * B * n_pad * (C_PAD * 64 + 64 * 128 + 128 * c_feat)
    bytes_accessed = (B * n_pad * C_PAD * 2                       # x (bf16)
                      + (C_PAD * 64 + 64 * 128 + 128 * c_feat) * 2
                      + (64 + 128 + c_feat) * 4
                      + B * c_feat * 4)                           # g out

    g = pl.pallas_call(
        functools.partial(_feature_kernel, n_valid=N, n_pad=n_pad, tile_n=tn),
        out_shape=jax.ShapeDtypeStruct((B, 1, c_feat), jnp.float32),
        grid=(B, n_pad // tn),
        in_specs=in_specs,
        out_specs=pl.BlockSpec((1, 1, c_feat), lambda b, nt: (b, 0, 0)),
        scratch_shapes=[pltpu.VMEM((1, c_feat), jnp.float32)],
        compiler_params=pltpu.CompilerParams(
            dimension_semantics=("parallel", "arbitrary"),
            # 48 MiB: fits tile_n=2048 live intermediates (~20 MB) with
            # headroom, and stays under v7x's 64 MiB physical VMEM.
            vmem_limit_bytes=48 * 1024 * 1024),
        cost_estimate=pl.CostEstimate(flops=flops, transcendentals=0,
                                      bytes_accessed=bytes_accessed),
    )(x_bnc, w1, b1, w2, b2, w3, b3)

    # Regressor + transform head: tiny batched matmuls, run once in plain XLA
    # (M=B sublane utilization instead of B serial M=1 matmuls in-kernel).
    g = g.reshape(B, c_feat)
    r = jnp.maximum(g @ w4 + b4, 0.0)       # Linear(1024,512)+BN(folded)+ReLU
    r = r @ w5 + b5                         # Linear(512,256)
    t = r @ w6 + b6                         # Linear(256, dim*dim), identity init
    return t.reshape(B, dim, dim)


# ----------------------------------------------------------------------------
# Deterministic parameter construction (shapes follow the PyTorch __init__).
# ----------------------------------------------------------------------------
def _fold_bn(w, b, gamma, beta, mean, var, eps=1e-5):
    """Fold eval-mode BatchNorm into a preceding y = x @ w + b layer."""
    scale = gamma / jnp.sqrt(var + eps)
    return ((w * scale[None, :]).astype(jnp.float32),
            ((b - mean) * scale + beta).astype(jnp.float32))


def make_params(key, dim=DIM, identity_head=True):
    ks = jax.random.split(key, 10)

    def lin(k, cin, cout, scale=0.1):
        kw, kb = jax.random.split(k)
        return (scale * jax.random.normal(kw, (cin, cout), jnp.float32),
                scale * jax.random.normal(kb, (cout,), jnp.float32))

    def bn(k, c):
        k1, k2, k3, k4 = jax.random.split(k, 4)
        return (1.0 + 0.1 * jax.random.normal(k1, (c,), jnp.float32),
                0.1 * jax.random.normal(k2, (c,), jnp.float32),
                0.1 * jax.random.normal(k3, (c,), jnp.float32),
                jnp.abs(1.0 + 0.1 * jax.random.normal(k4, (c,), jnp.float32)))

    # features: Conv1d(dim,64,1)+BN, Conv1d(64,128,1)+BN, Conv1d(128,1024,1)+BN
    w1, b1 = lin(ks[0], dim, 64);    w1, b1 = _fold_bn(w1, b1, *bn(ks[1], 64))
    w1 = jnp.pad(w1, ((0, C_PAD - dim), (0, 0)))   # zero rows for padded channels
    w2, b2 = lin(ks[2], 64, 128);    w2, b2 = _fold_bn(w2, b2, *bn(ks[3], 128))
    w3, b3 = lin(ks[4], 128, 1024);  w3, b3 = _fold_bn(w3, b3, *bn(ks[5], 1024))

    # regressor: Linear(1024,512)+BN+ReLU, Linear(512,256)
    w4, b4 = lin(ks[6], 1024, 512);  w4, b4 = _fold_bn(w4, b4, *bn(ks[7], 512))
    w5, b5 = lin(ks[8], 512, 256)

    # transform: Linear(256, dim*dim); _init_identity => W = 0, b = eye.flatten()
    if identity_head:
        w6 = jnp.zeros((256, dim * dim), jnp.float32)
        b6 = jnp.eye(dim, dtype=jnp.float32).reshape(-1)
    else:  # non-identity head used only by the self-test (exercises the features)
        w6, b6 = lin(ks[9], 256, dim * dim)

    row = lambda v: v.reshape(1, -1)
    return (w1.astype(jnp.bfloat16), row(b1),
            w2.astype(jnp.bfloat16), row(b2),
            w3.astype(jnp.bfloat16), row(b3),
            w4, row(b4), w5, row(b5), w6, row(b6))


def reference_forward(x_ncl, params, dim=DIM):
    """Pure-JAX (XLA) reference of the same bf16 / BN-folded forward pass."""
    (w1, b1, w2, b2, w3, b3, w4, b4, w5, b5, w6, b6) = params
    B = x_ncl.shape[0]
    x = jnp.transpose(x_ncl, (0, 2, 1)).astype(jnp.bfloat16)
    x = jnp.pad(x, ((0, 0), (0, 0), (0, C_PAD - dim)))
    h = jnp.maximum(jnp.dot(x, w1, preferred_element_type=jnp.float32) + b1, 0.0)
    h = jnp.maximum(jnp.dot(h.astype(jnp.bfloat16), w2,
                            preferred_element_type=jnp.float32) + b2, 0.0)
    h = jnp.maximum(jnp.dot(h.astype(jnp.bfloat16), w3,
                            preferred_element_type=jnp.float32) + b3, 0.0)
    g = jnp.max(h, axis=1)
    r = jnp.maximum(g @ w4 + b4, 0.0)
    r = r @ w5 + b5
    t = r @ w6 + b6
    return t.reshape(B, dim, dim)


if __name__ == "__main__":
    key = jax.random.PRNGKey(0)
    k_param, k_x1, k_x2 = jax.random.split(key, 3)

    # 1) Faithful module (identity-initialized transform head), small N.
    B, N = 2, 16
    params = make_params(k_param, DIM, identity_head=True)
    x = jax.random.normal(k_x1, (B, DIM, N), jnp.float32)   # (B, C, N) like PyTorch
    out = jax.block_until_ready(point_spatial_transformer(x, params, dim=DIM))
    assert out.shape == (B, DIM, DIM)
    ref = reference_forward(x, params, dim=DIM)
    assert jnp.allclose(out, ref, atol=1e-4, rtol=1e-4), (out, ref)
    # At identity init the transform head outputs the identity matrix.
    assert jnp.allclose(out, jnp.broadcast_to(jnp.eye(DIM), (B, DIM, DIM)), atol=1e-5)

    # 2) Non-identity head + multi-tile, non-multiple-of-128 N: exercises the
    #    running-max accumulator across tiles, the hoisted bias/ReLU finalize
    #    and the padded-point masking.
    B2, N2 = 2, 200
    params2 = make_params(k_param, DIM, identity_head=False)
    x2 = jax.random.normal(k_x2, (B2, DIM, N2), jnp.float32)
    out2 = jax.block_until_ready(
        point_spatial_transformer(x2, params2, dim=DIM, tile_n=128))
    ref2 = reference_forward(x2, params2, dim=DIM)
    assert out2.shape == (B2, DIM, DIM)
    assert jnp.allclose(out2, ref2, atol=1e-3, rtol=1e-3), (out2, ref2)

    print("KERNEL_OK")
</pallas_src>

<mosaic_0001>
module attributes {stable_mosaic.version = 11 : i64} {
  func.func @_feature_kernel(%arg0: i32, %arg1: i32, %arg2: memref<1x16x8xbf16, #tpu.memory_space<vmem>>, %arg3: memref<8x64xbf16, #tpu.memory_space<vmem>>, %arg4: memref<1x64xf32, #tpu.memory_space<vmem>>, %arg5: memref<64x128xbf16, #tpu.memory_space<vmem>>, %arg6: memref<1x128xf32, #tpu.memory_space<vmem>>, %arg7: memref<128x1024xbf16, #tpu.memory_space<vmem>>, %arg8: memref<1x1024xf32, #tpu.memory_space<vmem>>, %arg9: memref<1x1x1024xf32, #tpu.memory_space<vmem>>, %arg10: memref<1x1024xf32, #tpu.memory_space<vmem>>) attributes {dimension_semantics = [#tpu.dimension_semantics<parallel>, #tpu.dimension_semantics<arbitrary>], iteration_bounds = array<i64: 2, 1>, scalar_prefetch = 0 : i64, scratch_operands = 1 : i64, tpu.core_type = #tpu.core_type<tc>, window_params = [{transform_indices = @transform_0, window_bounds = array<i64: 1, 16, 8>}, {pipeline_mode = #tpu.pipeline_mode<synchronous>, transform_indices = @transform_1, window_bounds = array<i64: 8, 64>}, {pipeline_mode = #tpu.pipeline_mode<synchronous>, transform_indices = @transform_2, window_bounds = array<i64: 1, 64>}, {pipeline_mode = #tpu.pipeline_mode<synchronous>, transform_indices = @transform_3, window_bounds = array<i64: 64, 128>}, {pipeline_mode = #tpu.pipeline_mode<synchronous>, transform_indices = @transform_4, window_bounds = array<i64: 1, 128>}, {pipeline_mode = #tpu.pipeline_mode<synchronous>, transform_indices = @transform_5, window_bounds = array<i64: 128, 1024>}, {pipeline_mode = #tpu.pipeline_mode<synchronous>, transform_indices = @transform_6, window_bounds = array<i64: 1, 1024>}, {transform_indices = @transform_7, window_bounds = array<i64: 1, 1, 1024>}]} {
    %c0_i32 = arith.constant 0 : i32
    %0 = arith.cmpi eq, %arg1, %c0_i32 : i32
    %1 = arith.extui %0 : i1 to i32
    %c0_i32_0 = arith.constant 0 : i32
    %2 = arith.cmpi ne, %1, %c0_i32_0 : i32
    scf.if %2 {
      %cst_24 = arith.constant 0xFF800000 : f32
      %31 = vector.broadcast %cst_24 : f32 to vector<1x1024xf32>
      %c0_25 = arith.constant 0 : index
      %c0_26 = arith.constant 0 : index
      %32 = vector.load %arg10[%c0_25, %c0_26] : memref<1x1024xf32, #tpu.memory_space<vmem>>, vector<1x1024xf32>
      tpu.vector_store %arg10[%c0_25, %c0_26], %31 {strides = array<i32>} : memref<1x1024xf32, #tpu.memory_space<vmem>>, vector<1x1024xf32>,
    } else {
    }
    %c0 = arith.constant 0 : index
    %c0_1 = arith.constant 0 : index
    %c0_2 = arith.constant 0 : index
    %3 = vector.load %arg2[%c0, %c0_1, %c0_2] : memref<1x16x8xbf16, #tpu.memory_space<vmem>>, vector<1x16x8xbf16>
    %4 = vector.shape_cast %3 : vector<1x16x8xbf16> to vector<16x8xbf16>
    %c0_3 = arith.constant 0 : index
    %c0_4 = arith.constant 0 : index
    %5 = vector.load %arg3[%c0_3, %c0_4] : memref<8x64xbf16, #tpu.memory_space<vmem>>, vector<8x64xbf16>
    %cst = arith.constant dense<0.000000e+00> : vector<16x64xf32>
    %6 = tpu.matmul %4, %5, %cst {dimension_numbers = #tpu.dot_dimension_numbers<[1], [0], [0], [1], [0, 0, 1, 1], [], []>} : vector<16x8xbf16>, vector<8x64xbf16>, vector<16x64xf32> -> vector<16x64xf32>
    %c0_5 = arith.constant 0 : index
    %c0_6 = arith.constant 0 : index
    %7 = vector.load %arg4[%c0_5, %c0_6] : memref<1x64xf32, #tpu.memory_space<vmem>>, vector<1x64xf32>
    %8 = vector.broadcast %7 : vector<1x64xf32> to vector<16x64xf32>
    %9 = arith.addf %6, %8 : vector<16x64xf32>
    %cst_7 = arith.constant 0.000000e+00 : f32
    %10 = vector.broadcast %cst_7 : f32 to vector<16x64xf32>
    %11 = arith.maximumf %9, %10 : vector<16x64xf32>
    %12 = arith.truncf %11 : vector<16x64xf32> to vector<16x64xbf16>
    %c0_8 = arith.constant 0 : index
    %c0_9 = arith.constant 0 : index
    %13 = vector.load %arg5[%c0_8, %c0_9] : memref<64x128xbf16, #tpu.memory_space<vmem>>, vector<64x128xbf16>
    %cst_10 = arith.constant dense<0.000000e+00> : vector<16x128xf32>
    %14 = tpu.matmul %12, %13, %cst_10 {dimension_numbers = #tpu.dot_dimension_numbers<[1], [0], [0], [1], [0, 0, 1, 1], [], []>} : vector<16x64xbf16>, vector<64x128xbf16>, vector<16x128xf32> -> vector<16x128xf32>
    %c0_11 = arith.constant 0 : index
    %c0_12 = arith.constant 0 : index
    %15 = vector.load %arg6[%c0_11, %c0_12] : memref<1x128xf32, #tpu.memory_space<vmem>>, vector<1x128xf32>
    %16 = vector.broadcast %15 : vector<1x128xf32> to vector<16x128xf32>
    %17 = arith.addf %14, %16 : vector<16x128xf32>
    %cst_13 = arith.constant 0.000000e+00 : f32
    %18 = vector.broadcast %cst_13 : f32 to vector<16x128xf32>
    %19 = arith.maximumf %17, %18 : vector<16x128xf32>
    %20 = arith.truncf %19 : vector<16x128xf32> to vector<16x128xbf16>
    %c0_14 = arith.constant 0 : index
    %c0_15 = arith.constant 0 : index
    %21 = vector.load %arg7[%c0_14, %c0_15] : memref<128x1024xbf16, #tpu.memory_space<vmem>>, vector<128x1024xbf16>
    %cst_16 = arith.constant dense<0.000000e+00> : vector<16x1024xf32>
    %22 = tpu.matmul %20, %21, %cst_16 {dimension_numbers = #tpu.dot_dimension_numbers<[1], [0], [0], [1], [0, 0, 1, 1], [], []>} : vector<16x128xbf16>, vector<128x1024xbf16>, vector<16x1024xf32> -> vector<16x1024xf32>
    %c0_17 = arith.constant 0 : index
    %c0_18 = arith.constant 0 : index
    %23 = vector.load %arg10[%c0_17, %c0_18] : memref<1x1024xf32, #tpu.memory_space<vmem>>, vector<1x1024xf32>
    %cst_19 = arith.constant dense<0xFF800000> : vector<1024xf32>
    %24 = vector.multi_reduction <maximumf>, %22, %cst_19 [0] : vector<16x1024xf32> to vector<1024xf32>
    %25 = vector.shape_cast %24 : vector<1024xf32> to vector<1x1024xf32>
    %26 = arith.maximumf %23, %25 : vector<1x1024xf32>
    %c0_20 = arith.constant 0 : index
    %c0_21 = arith.constant 0 : index
    %27 = vector.load %arg10[%c0_20, %c0_21] : memref<1x1024xf32, #tpu.memory_space<vmem>>, vector<1x1024xf32>
    tpu.vector_store %arg10[%c0_20, %c0_21], %26 {strides = array<i32>} : memref<1x1024xf32, #tpu.memory_space<vmem>>, vector<1x1024xf32>,
    %c0_i32_22 = arith.constant 0 : i32
    %28 = arith.cmpi eq, %arg1, %c0_i32_22 : i32
    %29 = arith.extui %28 : i1 to i32
    %c0_i32_23 = arith.constant 0 : i32
    %30 = arith.cmpi ne, %29, %c0_i32_23 : i32
    scf.if %30 {
      %c0_24 = arith.constant 0 : index
      %c0_25 = arith.constant 0 : index
      %31 = vector.load %arg10[%c0_24, %c0_25] : memref<1x1024xf32, #tpu.memory_space<vmem>>, vector<1x1024xf32>
      %c0_26 = arith.constant 0 : index
      %c0_27 = arith.constant 0 : index
      %32 = vector.load %arg8[%c0_26, %c0_27] : memref<1x1024xf32, #tpu.memory_space<vmem>>, vector<1x1024xf32>
      %33 = arith.addf %31, %32 : vector<1x1024xf32>
      %cst_28 = arith.constant 0.000000e+00 : f32
      %34 = vector.broadcast %cst_28 : f32 to vector<1x1024xf32>
      %35 = arith.maximumf %33, %34 : vector<1x1024xf32>
      %c0_29 = arith.constant 0 : index
      %c0_30 = arith.constant 0 : index
      %c0_31 = arith.constant 0 : index
      %36 = vector.load %arg9[%c0_29, %c0_30, %c0_31] : memref<1x1x1024xf32, #tpu.memory_space<vmem>>, vector<1x1x1024xf32>
      %37 = vector.shape_cast %36 : vector<1x1x1024xf32> to vector<1x1024xf32>
      %38 = vector.shape_cast %35 : vector<1x1024xf32> to vector<1x1x1024xf32>
      tpu.vector_store %arg9[%c0_29, %c0_30, %c0_31], %38 {strides = array<i32>} : memref<1x1x1024xf32, #tpu.memory_space<vmem>>, vector<1x1x1024xf32>,
    } else {
    }
    return
  }
  func.func @transform_0(%arg0: i32, %arg1: i32) -> (i32, i32, i32) {
    %c0_i32 = arith.constant 0 : i32
    %c0_i32_0 = arith.constant 0 : i32
    return %arg0, %arg1, %c0_i32 : i32, i32, i32
  }
  func.func @transform_1(%arg0: i32, %arg1: i32) -> (i32, i32) {
    %c0_i32 = arith.constant 0 : i32
    %c0_i32_0 = arith.constant 0 : i32
    %c0_i32_1 = arith.constant 0 : i32
    return %c0_i32, %c0_i32_0 : i32, i32
  }
  func.func @transform_2(%arg0: i32, %arg1: i32) -> (i32, i32) {
    %c0_i32 = arith.constant 0 : i32
    %c0_i32_0 = arith.constant 0 : i32
    %c0_i32_1 = arith.constant 0 : i32
    return %c0_i32, %c0_i32_0 : i32, i32
  }
  func.func @transform_3(%arg0: i32, %arg1: i32) -> (i32, i32) {
    %c0_i32 = arith.constant 0 : i32
    %c0_i32_0 = arith.constant 0 : i32
    %c0_i32_1 = arith.constant 0 : i32
    return %c0_i32, %c0_i32_0 : i32, i32
  }
  func.func @transform_4(%arg0: i32, %arg1: i32) -> (i32, i32) {
    %c0_i32 = arith.constant 0 : i32
    %c0_i32_0 = arith.constant 0 : i32
    %c0_i32_1 = arith.constant 0 : i32
    return %c0_i32, %c0_i32_0 : i32, i32
  }
  func.func @transform_5(%arg0: i32, %arg1: i32) -> (i32, i32) {
    %c0_i32 = arith.constant 0 : i32
    %c0_i32_0 = arith.constant 0 : i32
    %c0_i32_1 = arith.constant 0 : i32
    return %c0_i32, %c0_i32_0 : i32, i32
  }
  func.func @transform_6(%arg0: i32, %arg1: i32) -> (i32, i32) {
    %c0_i32 = arith.constant 0 : i32
    %c0_i32_0 = arith.constant 0 : i32
    %c0_i32_1 = arith.constant 0 : i32
    return %c0_i32, %c0_i32_0 : i32, i32
  }
  func.func @transform_7(%arg0: i32, %arg1: i32) -> (i32, i32, i32) {
    %c0_i32 = arith.constant 0 : i32
    %c0_i32_0 = arith.constant 0 : i32
    %c0_i32_1 = arith.constant 0 : i32
    return %arg0, %c0_i32, %c0_i32_0 : i32, i32, i32
  }
}

</mosaic_0001>

<llo_original>
// kernel: point_spatial_transformer.1
$region0: #{point_spatial_transformer.1}
  #allocation0 [shape = 'u32[]', space=smem, size = 0x4, offset = 0x4, fixed_abs, tag = 'smem constant byte address 0x4 - core index']
  #allocation1 [shape = 'u32[144,128]{1,0:T(1,128)}', space=vmem, size = 0x12000, scoped, tag = 'internal scratch']
  #allocation2 [shape = 'f32[1,1024]{1,0:T(1,128)}', space=vmem, size = 0x1000, scoped, tag = 'scratch operand']
  %s0 = inlined_call_operand.vmem [shape: bf16[2,16,8], index: 0, kind: input, shape index: {}]
  %s1 = inlined_call_operand.hbm [shape: bf16[8,64], index: 1, kind: input, shape index: {}]
  %s2 = inlined_call_operand.hbm [shape: f32[1,64], index: 2, kind: input, shape index: {}]
  %s3 = inlined_call_operand.hbm [shape: bf16[64,128], index: 3, kind: input, shape index: {}]
  %s4 = inlined_call_operand.hbm [shape: f32[1,128], index: 4, kind: input, shape index: {}]
  %s5 = inlined_call_operand.hbm [shape: bf16[128,1024], index: 5, kind: input, shape index: {}]
  %s6 = inlined_call_operand.hbm [shape: f32[1,1024], index: 6, kind: input, shape index: {}]
  %s7 = inlined_call_operand.vmem [shape: f32[2,1,1024], index: 7, kind: output, shape index: {}]
  %s8 = sld [smem:[#allocation0]]
  $region93: #{point_spatial_transformer.1} parent=0
    _
  %s10 = ssub.s32 1, %s8
  %s11 = scalar_select 0, %s10, %s8
  $region1: #{point_spatial_transformer.1} parent=0
    #allocation3 [shape = 'u8[2048]{0}', space=vmem, size = 0x800, scoped, tag = 'input window, operand 1, single buffered']
    #allocation4 [shape = 's32[2]{0}', space=sflag, size = 0x8, scoped, tag = 'scoped memory for point_spatial_transformer.1']
    #allocation5 [shape = 'u8[512]{0}', space=vmem, size = 0x400, scoped, tag = 'input window, operand 2, single buffered']
    #allocation6 [shape = 's32[1]{0}', space=sflag, size = 0x4, scoped, tag = 'scoped memory for point_spatial_transformer.1']
    #allocation7 [shape = 'u8[16384]{0}', space=vmem, size = 0x4000, scoped, tag = 'input window, operand 3, single buffered']
    #allocation8 [shape = 'u8[512]{0}', space=vmem, size = 0x400, scoped, tag = 'input window, operand 4, single buffered']
    #allocation9 [shape = 's32[1]{0}', space=sflag, size = 0x4, scoped, tag = 'scoped memory for point_spatial_transformer.1']
    #allocation10 [shape = 'u8[262144]{0}', space=vmem, size = 0x40000, scoped, tag = 'input window, operand 5, single buffered']
    #allocation11 [shape = 'u8[4096]{0}', space=vmem, size = 0x1000, scoped, tag = 'input window, operand 6, single buffered']
    #allocation12 [shape = 's32[1]{0}', space=sflag, size = 0x4, scoped, tag = 'scoped memory for point_spatial_transformer.1']
    %12 = vsyncpa [#allocation4], 0
    %13 = vsyncpa [#allocation6], 0
    %14 = vsyncpa [#allocation9], 0
    %15 = vsyncpa [#allocation12], 0
    loop: start=0, step=1, limit=4
    $region2: #{point_spatial_transformer.1} parent=1 // loop_pre_header
      _
    $region3: #{point_spatial_transformer.1} parent=1 // loop_header
      %s17 = sphi 0, %s21
      %p18 = scmp.ge.s32.totalorder %s17, 4
      %s24 = sphi 0, %s36
      %s25 = sphi 0, %s32
      %s26 = sphi 0, %s24
      %s27 = sphi 0, %s25
      %s28 = sphi 0, %s26
      %s29 = sphi 0, %s27
      %s41 = sphi 0, %s43
      %s44 = sphi 0, %s41
      %s45 = sphi 0, %s44
      %s61 = sphi 0, %s45
      %s65 = sphi 0, %s65
      %s67 = sphi 0, %s65
      %s68 = sphi 0, %s67
      %s82 = sphi 0, %s68
      %s86 = sphi 0, %s86
      %s88 = sphi 0, %s86
      %s89 = sphi 0, %s88
      %s103 = sphi 0, %s89
      %s107 = sphi 0, %s107
      %s109 = sphi 0, %s107
      %s110 = sphi 0, %s109
      %s124 = sphi 0, %s110
      %s128 = sphi 0, %s128
      %s130 = sphi 0, %s128
      %s131 = sphi 0, %s130
      %s145 = sphi 0, %s131
      %s149 = sphi 0, %s149
      %s151 = sphi 0, %s149
      %s152 = sphi 0, %s151
      %s166 = sphi 0, %s152
      %s170 = sphi 0, %s170
      %s172 = sphi 0, %s170
      %s173 = sphi 0, %s172
      %s187 = sphi 0, %s173
      %s193 = sphi 0, %s195
      %s196 = sphi 0, %s193
      %s197 = sphi 0, %s196
      %s213 = sphi 0, %s197
    $region4: #{point_spatial_transformer.1} parent=1 // loop_header_branch
      %20 = sbr.rel (%p18) target = $region8
    $region5: #{point_spatial_transformer.1} parent=1 // loop_body
      %s22 = ssub.s32 %s17, 1
      %s23 = ssub.s32 %s17, 2
      %s30 = sadd.s32 1, %s25
      %p31 = scmp.ge.s32.totalorder %s30, 1
      %s32 = scalar_select %p31, 0, %s30
      %s33 = sadd.s32 1, %s24
      %s34 = scalar_select %p31, %s33, %s24
      %p35 = scmp.ge.s32.totalorder %s34, 2
      %s36 = scalar_select %p35, 0, %s34
      %s37 = ssub.s32 %s24, %s36
      %s38 = ssub.s32 %s25, %s32
      %s39 = sor.u32 %s37, %s38
      %p40 = scmp.eq.s32.totalorder %s39, 0
      %s42 = sadd.s32 %s41, 1
      %s43 = scalar_select %p40, %s41, %s42
      %p46 = pneg %p40
      %p47 = scmp.eq.s32.totalorder %s17, 1
      %p48 = por %p46, %p47
      %p49 = scmp.ne.s32.totalorder %s41, %s44
      %p50 = scmp.eq.s32.totalorder %s17, 0
      %p51 = por %p49, %p50
      %p52 = scmp.ne.s32.totalorder %s41, %s44
      %p53 = scmp.eq.s32.totalorder %s22, 1
      %p54 = por %p52, %p53
      %p55 = scmp.ne.s32.totalorder %s44, %s45
      %p56 = scmp.eq.s32.totalorder %s22, 0
      %p57 = por %p55, %p56
      %p58 = scmp.ne.s32.totalorder %s44, %s45
      %p59 = scmp.eq.s32.totalorder %s23, 1
      %p60 = por %p58, %p59
      %p62 = scmp.ne.s32.totalorder %s45, %s61
      %p63 = scmp.eq.s32.totalorder %s23, 0
      %p64 = por %p62, %p63
      %s66 = sadd.s32 %s65, 1
      %p69 = scmp.eq.s32.totalorder %s17, 1
      %p70 = scmp.ne.s32.totalorder %s65, %s67
      %p71 = scmp.eq.s32.totalorder %s17, 0
      %p72 = por %p70, %p71
      %p73 = scmp.ne.s32.totalorder %s65, %s67
      %p74 = scmp.eq.s32.totalorder %s22, 1
      %p75 = por %p73, %p74
      %p76 = scmp.ne.s32.totalorder %s67, %s68
      %p77 = scmp.eq.s32.totalorder %s22, 0
      %p78 = por %p76, %p77
      %p79 = scmp.ne.s32.totalorder %s67, %s68
      %p80 = scmp.eq.s32.totalorder %s23, 1
      %p81 = por %p79, %p80
      %p83 = scmp.ne.s32.totalorder %s68, %s82
      %p84 = scmp.eq.s32.totalorder %s23, 0
      %p85 = por %p83, %p84
      %s87 = sadd.s32 %s86, 1
      %p90 = scmp.eq.s32.totalorder %s17, 1
      %p91 = scmp.ne.s32.totalorder %s86, %s88
      %p92 = scmp.eq.s32.totalorder %s17, 0
      %p93 = por %p91, %p92
      %p94 = scmp.ne.s32.totalorder %s86, %s88
      %p95 = scmp.eq.s32.totalorder %s22, 1
      %p96 = por %p94, %p95
      %p97 = scmp.ne.s32.totalorder %s88, %s89
      %p98 = scmp.eq.s32.totalorder %s22, 0
      %p99 = por %p97, %p98
      %p100 = scmp.ne.s32.totalorder %s88, %s89
      %p101 = scmp.eq.s32.totalorder %s23, 1
      %p102 = por %p100, %p101
      %p104 = scmp.ne.s32.totalorder %s89, %s103
      %p105 = scmp.eq.s32.totalorder %s23, 0
      %p106 = por %p104, %p105
      %s108 = sadd.s32 %s107, 1
      %p111 = scmp.eq.s32.totalorder %s17, 1
      %p112 = scmp.ne.s32.totalorder %s107, %s109
      %p113 = scmp.eq.s32.totalorder %s17, 0
      %p114 = por %p112, %p113
      %p115 = scmp.ne.s32.totalorder %s107, %s109
      %p116 = scmp.eq.s32.totalorder %s22, 1
      %p117 = por %p115, %p116
      %p118 = scmp.ne.s32.totalorder %s109, %s110
      %p119 = scmp.eq.s32.totalorder %s22, 0
      %p120 = por %p118, %p119
      %p121 = scmp.ne.s32.totalorder %s109, %s110
      %p122 = scmp.eq.s32.totalorder %s23, 1
      %p123 = por %p121, %p122
      %p125 = scmp.ne.s32.totalorder %s110, %s124
      %p126 = scmp.eq.s32.totalorder %s23, 0
      %p127 = por %p125, %p126
      %s129 = sadd.s32 %s128, 1
      %p132 = scmp.eq.s32.totalorder %s17, 1
      %p133 = scmp.ne.s32.totalorder %s128, %s130
      %p134 = scmp.eq.s32.totalorder %s17, 0
      %p135 = por %p133, %p134
      %p136 = scmp.ne.s32.totalorder %s128, %s130
      %p137 = scmp.eq.s32.totalorder %s22, 1
      %p138 = por %p136, %p137
      %p139 = scmp.ne.s32.totalorder %s130, %s131
      %p140 = scmp.eq.s32.totalorder %s22, 0
      %p141 = por %p139, %p140
      %p142 = scmp.ne.s32.totalorder %s130, %s131
      %p143 = scmp.eq.s32.totalorder %s23, 1
      %p144 = por %p142, %p143
      %p146 = scmp.ne.s32.totalorder %s131, %s145
      %p147 = scmp.eq.s32.totalorder %s23, 0
      %p148 = por %p146, %p147
      %s150 = sadd.s32 %s149, 1
      %p153 = scmp.eq.s32.totalorder %s17, 1
      %p154 = scmp.ne.s32.totalorder %s149, %s151
      %p155 = scmp.eq.s32.totalorder %s17, 0
      %p156 = por %p154, %p155
      %p157 = scmp.ne.s32.totalorder %s149, %s151
      %p158 = scmp.eq.s32.totalorder %s22, 1
      %p159 = por %p157, %p158
      %p160 = scmp.ne.s32.totalorder %s151, %s152
      %p161 = scmp.eq.s32.totalorder %s22, 0
      %p162 = por %p160, %p161
      %p163 = scmp.ne.s32.totalorder %s151, %s152
      %p164 = scmp.eq.s32.totalorder %s23, 1
      %p165 = por %p163, %p164
      %p167 = scmp.ne.s32.totalorder %s152, %s166
      %p168 = scmp.eq.s32.totalorder %s23, 0
      %p169 = por %p167, %p168
      %s171 = sadd.s32 %s170, 1
      %p174 = scmp.eq.s32.totalorder %s17, 1
      %p175 = scmp.ne.s32.totalorder %s170, %s172
      %p176 = scmp.eq.s32.totalorder %s17, 0
      %p177 = por %p175, %p176
      %p178 = scmp.ne.s32.totalorder %s170, %s172
      %p179 = scmp.eq.s32.totalorder %s22, 1
      %p180 = por %p178, %p179
      %p181 = scmp.ne.s32.totalorder %s172, %s173
      %p182 = scmp.eq.s32.totalorder %s22, 0
      %p183 = por %p181, %p182
      %p184 = scmp.ne.s32.totalorder %s172, %s173
      %p185 = scmp.eq.s32.totalorder %s23, 1
      %p186 = por %p184, %p185
      %p188 = scmp.ne.s32.totalorder %s173, %s187
      %p189 = scmp.eq.s32.totalorder %s23, 0
      %p190 = por %p188, %p189
      %s191 = ssub.s32 %s24, %s36
      %p192 = scmp.eq.s32.totalorder %s191, 0
      %s194 = sadd.s32 %s193, 1
      %s195 = scalar_select %p192, %s193, %s194
      %p198 = pneg %p192
      %p199 = scmp.eq.s32.totalorder %s17, 1
      %p200 = por %p198, %p199
      %p201 = scmp.ne.s32.totalorder %s193, %s196
      %p202 = scmp.eq.s32.totalorder %s17, 0
      %p203 = por %p201, %p202
      %p204 = scmp.ne.s32.totalorder %s193, %s196
      %p205 = scmp.eq.s32.totalorder %s22, 1
      %p206 = por %p204, %p205
      %p207 = scmp.ne.s32.totalorder %s196, %s197
      %p208 = scmp.eq.s32.totalorder %s22, 0
      %p209 = por %p207, %p208
      %p210 = scmp.ne.s32.totalorder %s196, %s197
      %p211 = scmp.eq.s32.totalorder %s23, 1
      %p212 = por %p210, %p211
      %p214 = scmp.ne.s32.totalorder %s197, %s213
      %p215 = scmp.eq.s32.totalorder %s23, 0
      %p216 = por %p214, %p215
      %p217 = scmp.le.s32.totalorder 1, %s17
      %p218 = scmp.lt.s32.totalorder %s17, 3
      %p219 = pnand %p217, %p218
      %p220 = pneg %p219
      // Predicated region
      $region9: #{point_spatial_transformer.1} parent=5 // pred_check
        _
      $region10: #{point_spatial_transformer.1} parent=5 // pred_check_branch
        %222 = sbr.rel (%p219) target = $region12
      $region11: #{point_spatial_transformer.1} parent=5 // pred_region
        %s223 = ssub.s32 %s17, 1
        // Predicated region
        $region13: #{point_spatial_transformer.1} parent=11 // pred_check
          %p224 = pneg %p78
        $region14: #{point_spatial_transformer.1} parent=11 // pred_check_branch
          %226 = sbr.rel (%p224) target = $region16
        $region15: #{point_spatial_transformer.1} parent=11 // pred_region
          %s228 = ssub.s32 64, 64
          %229 = vsyncadd [#allocation4], %s228
          %s231 = sshll.u32 [#allocation3], 4
          %s232 = int_to_ptr.vmem [resolvable:$true] %s231
          %234 = dma.hbm_to_vmem [thread:$0]  %s1, 64, %s232, [#allocation4]
        $region16: #{point_spatial_transformer.1} parent=11 // pred_fallthru
          _
        // Predicated region
        $region17: #{point_spatial_transformer.1} parent=11 // pred_check
          %p235 = pneg %p99
        $region18: #{point_spatial_transformer.1} parent=11 // pred_check_branch
          %237 = sbr.rel (%p235) target = $region20
        $region19: #{point_spatial_transformer.1} parent=11 // pred_region
          %s239 = ssub.s32 16, 16
          %240 = vsyncadd [#allocation6], %s239
          %s242 = sshll.u32 [#allocation5], 4
          %s243 = int_to_ptr.vmem [resolvable:$true] %s242
          %245 = dma.hbm_to_vmem [thread:$0]  %s2, 16, %s243, [#allocation6]
        $region20: #{point_spatial_transformer.1} parent=11 // pred_fallthru
          _
        // Predicated region
        $region21: #{point_spatial_transformer.1} parent=11 // pred_check
          %p246 = pneg %p120
        $region22: #{point_spatial_transformer.1} parent=11 // pred_check_branch
          %248 = sbr.rel (%p246) target = $region24
        $region23: #{point_spatial_transformer.1} parent=11 // pred_region
          %s250 = ssub.s32 512, 512
          %251 = vsyncadd [#allocation6], %s250
          %s252 = sshll.u32 [#allocation7], 4
          %s253 = int_to_ptr.vmem [resolvable:$true] %s252
          %258 = dma.hbm_to_vmem [thread:$0]  %s3, 512, %s253, [#allocation6], 64, 64, 4
        $region24: #{point_spatial_transformer.1} parent=11 // pred_fallthru
          _
        // Predicated region
        $region25: #{point_spatial_transformer.1} parent=11 // pred_check
          %p259 = pneg %p141
        $region26: #{point_spatial_transformer.1} parent=11 // pred_check_branch
          %261 = sbr.rel (%p259) target = $region28
        $region27: #{point_spatial_transformer.1} parent=11 // pred_region
          %s263 = ssub.s32 16, 16
          %264 = vsyncadd [#allocation9], %s263
          %s266 = sshll.u32 [#allocation8], 4
          %s267 = int_to_ptr.vmem [resolvable:$true] %s266
          %269 = dma.hbm_to_vmem [thread:$0]  %s4, 16, %s267, [#allocation9]
        $region28: #{point_spatial_transformer.1} parent=11 // pred_fallthru
          _
        // Predicated region
        $region29: #{point_spatial_transformer.1} parent=11 // pred_check
          %p270 = pneg %p162
        $region30: #{point_spatial_transformer.1} parent=11 // pred_check_branch
          %272 = sbr.rel (%p270) target = $region32
        $region31: #{point_spatial_transformer.1} parent=11 // pred_region
          %s274 = ssub.s32 8192, 8192
          %275 = vsyncadd [#allocation9], %s274
          %s276 = sshll.u32 [#allocation10], 4
          %s277 = int_to_ptr.vmem [resolvable:$true] %s276
          %282 = dma.hbm_to_vmem [thread:$0]  %s5, 8192, %s277, [#allocation9], 512, 512, 32
        $region32: #{point_spatial_transformer.1} parent=11 // pred_fallthru
          _
        // Predicated region
        $region33: #{point_spatial_transformer.1} parent=11 // pred_check
          %p283 = pneg %p183
        $region34: #{point_spatial_transformer.1} parent=11 // pred_check_branch
          %285 = sbr.rel (%p283) target = $region36
        $region35: #{point_spatial_transformer.1} parent=11 // pred_region
          %s287 = ssub.s32 128, 128
          %288 = vsyncadd [#allocation12], %s287
          %s290 = sshll.u32 [#allocation11], 4
          %s291 = int_to_ptr.vmem [resolvable:$true] %s290
          %293 = dma.hbm_to_vmem [thread:$0]  %s6, 128, %s291, [#allocation12]
        $region36: #{point_spatial_transformer.1} parent=11 // pred_fallthru
          _
      $region12: #{point_spatial_transformer.1} parent=5 // pred_fallthru
        _
      %p294 = scmp.lt.s32.totalorder %s17, 2
      // Predicated region
      $region37: #{point_spatial_transformer.1} parent=5 // pred_check
        %p295 = pneg %p294
      $region38: #{point_spatial_transformer.1} parent=5 // pred_check_branch
        %297 = sbr.rel (%p295) target = $region40
      $region39: #{point_spatial_transformer.1} parent=5 // pred_region
        // Predicated region
        $region41: #{point_spatial_transformer.1} parent=39 // pred_check
          %p298 = pneg %p51
        $region42: #{point_spatial_transformer.1} parent=39 // pred_check_branch
          %300 = sbr.rel (%p298) target = $region44
        $region43: #{point_spatial_transformer.1} parent=39 // pred_region
          %s301 = smul.u32 2, %s25
          %p302 = scmp.lt.s32.totalorder %s24, 1
          %s303 = scalar_select %p302, %s24, 1
          %p304 = scmp.lt.s32.totalorder %s301, 1
          %s305 = scalar_select %p304, %s301, 1
          %s306 = smul.addr %s303, 2
          %s307 = sadd.s32 %s305, %s306
          %s308 = smul.addr %s307, 4
          %s309 = scalar_lea.vmem %s0, %s308
          %s310 = smul.u32 2, %s25
        $region44: #{point_spatial_transformer.1} parent=39 // pred_fallthru
          _
      $region40: #{point_spatial_transformer.1} parent=5 // pred_fallthru
        _
      %p311 = scmp.le.s32.totalorder 1, %s17
      %p312 = scmp.lt.s32.totalorder %s17, 3
      %p313 = pnand %p311, %p312
      %p314 = pneg %p313
      // Predicated region
      $region45: #{point_spatial_transformer.1} parent=5 // pred_check
        _
      $region46: #{point_spatial_transformer.1} parent=5 // pred_check_branch
        %316 = sbr.rel (%p313) target = $region48
      $region47: #{point_spatial_transformer.1} parent=5 // pred_region
        %s317 = ssub.s32 %s17, 1
        // Predicated region
        $region49: #{point_spatial_transformer.1} parent=47 // pred_check
          %p318 = pneg %p78
        $region50: #{point_spatial_transformer.1} parent=47 // pred_check_branch
          %320 = sbr.rel (%p318) target = $region52
        $region51: #{point_spatial_transformer.1} parent=47 // pred_region
          %321 = dma.done [#allocation4], 64
        $region52: #{point_spatial_transformer.1} parent=47 // pred_fallthru
          _
        // Predicated region
        $region53: #{point_spatial_transformer.1} parent=47 // pred_check
          %p322 = pneg %p99
        $region54: #{point_spatial_transformer.1} parent=47 // pred_check_branch
          %324 = sbr.rel (%p322) target = $region56
        $region55: #{point_spatial_transformer.1} parent=47 // pred_region
          %325 = dma.done [#allocation6], 16
        $region56: #{point_spatial_transformer.1} parent=47 // pred_fallthru
          _
        // Predicated region
        $region57: #{point_spatial_transformer.1} parent=47 // pred_check
          %p326 = pneg %p120
        $region58: #{point_spatial_transformer.1} parent=47 // pred_check_branch
          %328 = sbr.rel (%p326) target = $region60
        $region59: #{point_spatial_transformer.1} parent=47 // pred_region
          %329 = dma.done [#allocation6], 512
        $region60: #{point_spatial_transformer.1} parent=47 // pred_fallthru
          _
        // Predicated region
        $region61: #{point_spatial_transformer.1} parent=47 // pred_check
          %p330 = pneg %p141
        $region62: #{point_spatial_transformer.1} parent=47 // pred_check_branch
          %332 = sbr.rel (%p330) target = $region64
        $region63: #{point_spatial_transformer.1} parent=47 // pred_region
          %333 = dma.done [#allocation9], 16
        $region64: #{point_spatial_transformer.1} parent=47 // pred_fallthru
          _
        // Predicated region
        $region65: #{point_spatial_transformer.1} parent=47 // pred_check
          %p334 = pneg %p162
        $region66: #{point_spatial_transformer.1} parent=47 // pred_check_branch
          %336 = sbr.rel (%p334) target = $region68
        $region67: #{point_spatial_transformer.1} parent=47 // pred_region
          %337 = dma.done [#allocation9], 8192
        $region68: #{point_spatial_transformer.1} parent=47 // pred_fallthru
          _
        // Predicated region
        $region69: #{point_spatial_transformer.1} parent=47 // pred_check
          %p338 = pneg %p183
        $region70: #{point_spatial_transformer.1} parent=47 // pred_check_branch
          %340 = sbr.rel (%p338) target = $region72
        $region71: #{point_spatial_transformer.1} parent=47 // pred_region
          %341 = dma.done [#allocation12], 128
        $region72: #{point_spatial_transformer.1} parent=47 // pred_fallthru
          _
        %s342 = smul.u32 2, %s27
        %p343 = scmp.lt.s32.totalorder %s26, 1
        %s344 = scalar_select %p343, %s26, 1
        %p345 = scmp.lt.s32.totalorder %s342, 1
        %s346 = scalar_select %p345, %s342, 1
        %s347 = smul.addr %s344, 2
        %s348 = sadd.s32 %s346, %s347
        %s349 = smul.addr %s348, 4
        %s350 = scalar_lea.vmem %s0, %s349
        %p351 = pneg %p57
        %p352 = pneg %p54
        %p353 = pneg %p78
        %p354 = pneg %p75
        %p355 = pneg %p99
        %p356 = pneg %p96
        %p357 = pneg %p120
        %p358 = pneg %p117
        %p359 = pneg %p141
        %p360 = pneg %p138
        %p361 = pneg %p162
        %p362 = pneg %p159
        %p363 = pneg %p183
        %p364 = pneg %p180
        %p365 = pneg %p209
        %p366 = pneg %p206
        %p367 = scmp.lt.s32.totalorder %s26, 1
        %s368 = scalar_select %p367, %s26, 1
        %s369 = smul.addr %s368, 8
        %s370 = scalar_lea.vmem %s7, %s369
        %s371 = smul.u32 2, %s27
        %p372 = scmp.lt.s32.totalorder %s26, 1
        %s373 = scalar_select %p372, %s26, 1
        %p374 = scmp.lt.s32.totalorder %s371, 1
        %s375 = scalar_select %p374, %s371, 1
        %s376 = smul.addr %s373, 2
        %s377 = sadd.s32 %s375, %s376
        %s378 = smul.addr %s377, 4
        %s379 = scalar_lea.vmem %s0, %s378
        %s380 = smul.u32 2, %s27
        %p381 = scmp.lt.s32.totalorder %s26, 1
        %s382 = scalar_select %p381, %s26, 1
        %s383 = smul.addr %s382, 8
        %s384 = scalar_lea.vmem %s7, %s383
        %p386 = scmp.eq.s32.totalorder %s27, 0
        // Predicated region
        $region73: #{point_spatial_transformer.1} parent=47 // pred_check
          %p387 = pneg %p386
        $region74: #{point_spatial_transformer.1} parent=47 // pred_check_branch
          %389 = sbr.rel (%p387) target = $region76
        $region75: #{point_spatial_transformer.1} parent=47 // pred_region
          %390 = vst [vmem:[#allocation2] sm:$0xff] -inf
        $region76: #{point_spatial_transformer.1} parent=47 // pred_fallthru
          _
        %v391 = vld [vmem:[%s379] sm:$0xf]
        %v392 = vld [vmem:[%s379 + $0x4] sm:$0xf]
        %v393 = vld [vmem:[#allocation3] sm:$0xf]
        %v394 = vld [vmem:[#allocation5] sm:$0x1]
        %v396 = vlaneseq
        %v397 = vshrl.u32 %v396, 7
        %v398 = vsub.s32 0, %v397
        %v399 = vrot.slane %v394, %v398
        %v403 = vunpack.c.l.b16 %v391
        %v404 = vunpack.c.l.b16 %v392
        %v405 = vpack.c.b16 %v404, %v403
        %vm406 = vcmask 64512
        %v408 = vsel %vm406, %v405, 0
        %vm410 = vcmask 1043456
        %v412 = vsel %vm410, %v393, 0
        %414 = vmatprep.subr.bf16.mxu0 0
        %415 = vmatpush1.bf16.msra.mxu0 %v412
        %416 = vmatprep.subr.bf16.mxu0 0
        %417 = vmatpush1.bf16.msra.mxu0 0
        %418 = vmatprep.subr.bf16.mxu0 0
        %419 = vmatpush1.bf16.msra.mxu0 0
        %420 = vmatprep.subr.bf16.mxu0 0
        %421 = vmatpush1.bf16.msra.mxu0 0
        %422 = vmatprep.subr.bf16.mxu0 0
        %423 = vmatpush1.bf16.msra.mxu0 0
        %424 = vmatprep.subr.bf16.mxu0 0
        %425 = vmatpush1.bf16.msra.mxu0 0
        %426 = vmatprep.subr.bf16.mxu0 0
        %427 = vmatpush1.bf16.msra.mxu0 0
        %428 = vmatprep.subr.bf16.mxu0 0
        %429 = vmatpush1.bf16.msra.mxu0 0
        %430 = vmatprep.subr.bf16.mxu0 0
        %431 = vmatpush1.bf16.msra.mxu0 0
        %432 = vmatprep.subr.bf16.mxu0 0
        %433 = vmatpush1.bf16.msra.mxu0 0
        %434 = vmatprep.subr.bf16.mxu0 0
        %435 = vmatpush1.bf16.msra.mxu0 0
        %436 = vmatprep.subr.bf16.mxu0 0
        %437 = vmatpush1.bf16.msra.mxu0 0
        %438 = vmatprep.subr.bf16.mxu0 0
        %439 = vmatpush1.bf16.msra.mxu0 0
        %440 = vmatprep.subr.bf16.mxu0 0
        %441 = vmatpush1.bf16.msra.mxu0 0
        %442 = vmatprep.subr.bf16.mxu0 0
        %443 = vmatpush1.bf16.msra.mxu0 0
        %444 = vmatprep.subr.bf16.mxu0 0
        %445 = vmatpush1.bf16.msra.mxu0 0
        %446 = vmatprep.mubr.bf16.mxu0 0
        %447 = vmatmul.mubr.bf16.gmra.mrb[0].mxu0 %v408
        %v448 = vpop.f32.mrb[0].mxu0
        %v449 = vadd.f32 %v399, %v448
        %v450 = vpop.f32.mrb[0].mxu0
        %v451 = vpop.f32.mrb[0].mxu0
        %v452 = vadd.f32 %v399, %v451
        %v453 = vpop.f32.mrb[0].mxu0
        %454 = vdwg.mxu0
        %v455 = vmax.f32 %v449, 0.0
        %v456 = vmax.f32 %v452, 0.0
        %v457 = vpack.c.bf16 %v456, %v455
        %v458 = vld [vmem:[#allocation7] sm:$0xf]
        %v459 = vld [vmem:[#allocation7 + $0x4] sm:$0xf]
        %v460 = vld [vmem:[#allocation7 + $0x8] sm:$0xf]
        %v461 = vld [vmem:[#allocation7 + $0xc] sm:$0xf]
        %v462 = vld [vmem:[#allocation7 + $0x10] sm:$0xf]
        %v463 = vld [vmem:[#allocation7 + $0x14] sm:$0xf]
        %v464 = vld [vmem:[#allocation7 + $0x18] sm:$0xf]
        %v465 = vld [vmem:[#allocation7 + $0x1c] sm:$0xf]
        %v466 = vld [vmem:[#allocation8] sm:$0x1]
        %v468 = vlaneseq
        %v469 = vshrl.u32 %v468, 7
        %v470 = vsub.s32 0, %v469
        %v471 = vrot.slane %v466, %v470
        %v481 = vunpack.c.l.b16 %v458
        %v482 = vunpack.c.l.b16 %v459
        %v483 = vunpack.c.l.b16 %v460
        %v484 = vunpack.c.l.b16 %v461
        %v485 = vunpack.c.l.b16 %v462
        %v486 = vunpack.c.l.b16 %v463
        %v487 = vunpack.c.l.b16 %v464
        %v488 = vunpack.c.l.b16 %v465
        %v489 = vpack.c.b16 %v482, %v481
        %v490 = vpack.c.b16 %v484, %v483
        %v491 = vpack.c.b16 %v486, %v485
        %v492 = vpack.c.b16 %v488, %v487
        %vm497 = vcmask 523264
        %v499 = vsel %vm497, %v457, 0
        %501 = vmatprep.subr.bf16.mxu0 0
        %502 = vmatpush1.bf16.msra.mxu0 %v489
        %503 = vmatprep.subr.bf16.mxu0 0
        %504 = vmatpush1.bf16.msra.mxu0 %v490
        %505 = vmatprep.subr.bf16.mxu0 0
        %506 = vmatpush1.bf16.msra.mxu0 %v491
        %507 = vmatprep.subr.bf16.mxu0 0
        %508 = vmatpush1.bf16.msra.mxu0 %v492
        %509 = vmatprep.subr.bf16.mxu0 0
        %510 = vmatpush1.bf16.msra.mxu0 0
        %511 = vmatprep.subr.bf16.mxu0 0
        %512 = vmatpush1.bf16.msra.mxu0 0
        %513 = vmatprep.subr.bf16.mxu0 0
        %514 = vmatpush1.bf16.msra.mxu0 0
        %515 = vmatprep.subr.bf16.mxu0 0
        %516 = vmatpush1.bf16.msra.mxu0 0
        %517 = vmatprep.subr.bf16.mxu0 0
        %518 = vmatpush1.bf16.msra.mxu0 0
        %519 = vmatprep.subr.bf16.mxu0 0
        %520 = vmatpush1.bf16.msra.mxu0 0
        %521 = vmatprep.subr.bf16.mxu0 0
        %522 = vmatpush1.bf16.msra.mxu0 0
        %523 = vmatprep.subr.bf16.mxu0 0
        %524 = vmatpush1.bf16.msra.mxu0 0
        %525 = vmatprep.subr.bf16.mxu0 0
        %526 = vmatpush1.bf16.msra.mxu0 0
        %527 = vmatprep.subr.bf16.mxu0 0
        %528 = vmatpush1.bf16.msra.mxu0 0
        %529 = vmatprep.subr.bf16.mxu0 0
        %530 = vmatpush1.bf16.msra.mxu0 0
        %531 = vmatprep.subr.bf16.mxu0 0
        %532 = vmatpush1.bf16.msra.mxu0 0
        %533 = vmatprep.mubr.bf16.mxu0 0
        %534 = vmatmul.mubr.bf16.gmra.mrb[0].mxu0 %v499
        %v535 = vpop.f32.mrb[0].mxu0
        %v536 = vadd.f32 %v471, %v535
        %v537 = vpop.f32.mrb[0].mxu0
        %v538 = vpop.f32.mrb[0].mxu0
        %v539 = vadd.f32 %v471, %v538
        %v540 = vpop.f32.mrb[0].mxu0
        %541 = vdwg.mxu0
        %v542 = vmax.f32 %v536, 0.0
        %v543 = vmax.f32 %v539, 0.0
        %v544 = vpack.c.bf16 %v543, %v542
        %v545 = vld [vmem:[#allocation10] sm:$0xff]
        %v546 = vld [vmem:[#allocation10 + $0x8] sm:$0xff]
        %v547 = vld [vmem:[#allocation10 + $0x10] sm:$0xff]
        %v548 = vld [vmem:[#allocation10 + $0x18] sm:$0xff]
        %v549 = vld [vmem:[#allocation10 + $0x20] sm:$0xff]
        %v550 = vld [vmem:[#allocation10 + $0x28] sm:$0xff]
        %v551 = vld [vmem:[#allocation10 + $0x30] sm:$0xff]
        %v552 = vld [vmem:[#allocation10 + $0x38] sm:$0xff]
        %v553 = vld [vmem:[#allocation10 + $0x40] sm:$0xff]
        %v554 = vld [vmem:[#allocation10 + $0x48] sm:$0xff]
        %v555 = vld [vmem:[#allocation10 + $0x50] sm:$0xff]
        %v556 = vld [vmem:[#allocation10 + $0x58] sm:$0xff]
        %v557 = vld [vmem:[#allocation10 + $0x60] sm:$0xff]
        %v558 = vld [vmem:[#allocation10 + $0x68] sm:$0xff]
        %v559 = vld [vmem:[#allocation10 + $0x70] sm:$0xff]
        %v560 = vld [vmem:[#allocation10 + $0x78] sm:$0xff]
        %v561 = vld [vmem:[#allocation10 + $0x80] sm:$0xff]
        %v562 = vld [vmem:[#allocation10 + $0x88] sm:$0xff]
        %v563 = vld [vmem:[#allocation10 + $0x90] sm:$0xff]
        %v564 = vld [vmem:[#allocation10 + $0x98] sm:$0xff]
        %v565 = vld [vmem:[#allocation10 + $0xa0] sm:$0xff]
        %v566 = vld [vmem:[#allocation10 + $0xa8] sm:$0xff]
        %v567 = vld [vmem:[#allocation10 + $0xb0] sm:$0xff]
        %v568 = vld [vmem:[#allocation10 + $0xb8] sm:$0xff]
        %v569 = vld [vmem:[#allocation10 + $0xc0] sm:$0xff]
        %v570 = vld [vmem:[#allocation10 + $0xc8] sm:$0xff]
        %v571 = vld [vmem:[#allocation10 + $0xd0] sm:$0xff]
        %v572 = vld [vmem:[#allocation10 + $0xd8] sm:$0xff]
        %v573 = vld [vmem:[#allocation10 + $0xe0] sm:$0xff]
        %v574 = vld [vmem:[#allocation10 + $0xe8] sm:$0xff]
        %v575 = vld [vmem:[#allocation10 + $0xf0] sm:$0xff]
        %v576 = vld [vmem:[#allocation10 + $0xf8] sm:$0xff]
        %v577 = vld [vmem:[#allocation10 + $0x100] sm:$0xff]
        %v578 = vld [vmem:[#allocation10 + $0x108] sm:$0xff]
        %v579 = vld [vmem:[#allocation10 + $0x110] sm:$0xff]
        %v580 = vld [vmem:[#allocation10 + $0x118] sm:$0xff]
        %v581 = vld [vmem:[#allocation10 + $0x120] sm:$0xff]
        %v582 = vld [vmem:[#allocation10 + $0x128] sm:$0xff]
        %v583 = vld [vmem:[#allocation10 + $0x130] sm:$0xff]
        %v584 = vld [vmem:[#allocation10 + $0x138] sm:$0xff]
        %v585 = vld [vmem:[#allocation10 + $0x140] sm:$0xff]
        %v586 = vld [vmem:[#allocation10 + $0x148] sm:$0xff]
        %v587 = vld [vmem:[#allocation10 + $0x150] sm:$0xff]
        %v588 = vld [vmem:[#allocation10 + $0x158] sm:$0xff]
        %v589 = vld [vmem:[#allocation10 + $0x160] sm:$0xff]
        %v590 = vld [vmem:[#allocation10 + $0x168] sm:$0xff]
        %v591 = vld [vmem:[#allocation10 + $0x170] sm:$0xff]
        %v592 = vld [vmem:[#allocation10 + $0x178] sm:$0xff]
        %v593 = vld [vmem:[#allocation10 + $0x180] sm:$0xff]
        %v594 = vld [vmem:[#allocation10 + $0x188] sm:$0xff]
        %v595 = vld [vmem:[#allocation10 + $0x190] sm:$0xff]
        %v596 = vld [vmem:[#allocation10 + $0x198] sm:$0xff]
        %v597 = vld [vmem:[#allocation10 + $0x1a0] sm:$0xff]
        %v598 = vld [vmem:[#allocation10 + $0x1a8] sm:$0xff]
        %v599 = vld [vmem:[#allocation10 + $0x1b0] sm:$0xff]
        %v600 = vld [vmem:[#allocation10 + $0x1b8] sm:$0xff]
        %v601 = vld [vmem:[#allocation10 + $0x1c0] sm:$0xff]
        %v602 = vld [vmem:[#allocation10 + $0x1c8] sm:$0xff]
        %v603 = vld [vmem:[#allocation10 + $0x1d0] sm:$0xff]
        %v604 = vld [vmem:[#allocation10 + $0x1d8] sm:$0xff]
        %v605 = vld [vmem:[#allocation10 + $0x1e0] sm:$0xff]
        %v606 = vld [vmem:[#allocation10 + $0x1e8] sm:$0xff]
        %v607 = vld [vmem:[#allocation10 + $0x1f0] sm:$0xff]
        %v608 = vld [vmem:[#allocation10 + $0x1f8] sm:$0xff]
        %v673 = vunpack.c.l.b16 %v545
        %v674 = vunpack.c.h.b16 %v545
        %v675 = vunpack.c.l.b16 %v546
        %v676 = vunpack.c.h.b16 %v546
        %v677 = vunpack.c.l.b16 %v547
        %v678 = vunpack.c.h.b16 %v547
        %v679 = vunpack.c.l.b16 %v548
        %v680 = vunpack.c.h.b16 %v548
        %v681 = vunpack.c.l.b16 %v549
        %v682 = vunpack.c.h.b16 %v549
        %v683 = vunpack.c.l.b16 %v550
        %v684 = vunpack.c.h.b16 %v550
        %v685 = vunpack.c.l.b16 %v551
        %v686 = vunpack.c.h.b16 %v551
        %v687 = vunpack.c.l.b16 %v552
        %v688 = vunpack.c.h.b16 %v552
        %v689 = vunpack.c.l.b16 %v553
        %v690 = vunpack.c.h.b16 %v553
        %v691 = vunpack.c.l.b16 %v554
        %v692 = vunpack.c.h.b16 %v554
        %v693 = vunpack.c.l.b16 %v555
        %v694 = vunpack.c.h.b16 %v555
        %v695 = vunpack.c.l.b16 %v556
        %v696 = vunpack.c.h.b16 %v556
        %v697 = vunpack.c.l.b16 %v557
        %v698 = vunpack.c.h.b16 %v557
        %v699 = vunpack.c.l.b16 %v558
        %v700 = vunpack.c.h.b16 %v558
        %v701 = vunpack.c.l.b16 %v559
        %v702 = vunpack.c.h.b16 %v559
        %v703 = vunpack.c.l.b16 %v560
        %v704 = vunpack.c.h.b16 %v560
        %v705 = vunpack.c.l.b16 %v561
        %v706 = vunpack.c.h.b16 %v561
        %v707 = vunpack.c.l.b16 %v562
        %v708 = vunpack.c.h.b16 %v562
        %v709 = vunpack.c.l.b16 %v563
        %v710 = vunpack.c.h.b16 %v563
        %v711 = vunpack.c.l.b16 %v564
        %v712 = vunpack.c.h.b16 %v564
        %v713 = vunpack.c.l.b16 %v565
        %v714 = vunpack.c.h.b16 %v565
        %v715 = vunpack.c.l.b16 %v566
        %v716 = vunpack.c.h.b16 %v566
        %v717 = vunpack.c.l.b16 %v567
        %v718 = vunpack.c.h.b16 %v567
        %v719 = vunpack.c.l.b16 %v568
        %v720 = vunpack.c.h.b16 %v568
        %v721 = vunpack.c.l.b16 %v569
        %v722 = vunpack.c.h.b16 %v569
        %v723 = vunpack.c.l.b16 %v570
        %v724 = vunpack.c.h.b16 %v570
        %v725 = vunpack.c.l.b16 %v571
        %v726 = vunpack.c.h.b16 %v571
        %v727 = vunpack.c.l.b16 %v572
        %v728 = vunpack.c.h.b16 %v572
        %v729 = vunpack.c.l.b16 %v573
        %v730 = vunpack.c.h.b16 %v573
        %v731 = vunpack.c.l.b16 %v574
        %v732 = vunpack.c.h.b16 %v574
        %v733 = vunpack.c.l.b16 %v575
        %v734 = vunpack.c.h.b16 %v575
        %v735 = vunpack.c.l.b16 %v576
        %v736 = vunpack.c.h.b16 %v576
        %v737 = vunpack.c.l.b16 %v577
        %v738 = vunpack.c.h.b16 %v577
        %v739 = vunpack.c.l.b16 %v578
        %v740 = vunpack.c.h.b16 %v578
        %v741 = vunpack.c.l.b16 %v579
        %v742 = vunpack.c.h.b16 %v579
        %v743 = vunpack.c.l.b16 %v580
        %v744 = vunpack.c.h.b16 %v580
        %v745 = vunpack.c.l.b16 %v581
        %v746 = vunpack.c.h.b16 %v581
        %v747 = vunpack.c.l.b16 %v582
        %v748 = vunpack.c.h.b16 %v582
        %v749 = vunpack.c.l.b16 %v583
        %v750 = vunpack.c.h.b16 %v583
        %v751 = vunpack.c.l.b16 %v584
        %v752 = vunpack.c.h.b16 %v584
        %v753 = vunpack.c.l.b16 %v585
        %v754 = vunpack.c.h.b16 %v585
        %v755 = vunpack.c.l.b16 %v586
        %v756 = vunpack.c.h.b16 %v586
        %v757 = vunpack.c.l.b16 %v587
        %v758 = vunpack.c.h.b16 %v587
        %v759 = vunpack.c.l.b16 %v588
        %v760 = vunpack.c.h.b16 %v588
        %v761 = vunpack.c.l.b16 %v589
        %v762 = vunpack.c.h.b16 %v589
        %v763 = vunpack.c.l.b16 %v590
        %v764 = vunpack.c.h.b16 %v590
        %v765 = vunpack.c.l.b16 %v591
        %v766 = vunpack.c.h.b16 %v591
        %v767 = vunpack.c.l.b16 %v592
        %v768 = vunpack.c.h.b16 %v592
        %v769 = vunpack.c.l.b16 %v593
        %v770 = vunpack.c.h.b16 %v593
        %v771 = vunpack.c.l.b16 %v594
        %v772 = vunpack.c.h.b16 %v594
        %v773 = vunpack.c.l.b16 %v595
        %v774 = vunpack.c.h.b16 %v595
        %v775 = vunpack.c.l.b16 %v596
        %v776 = vunpack.c.h.b16 %v596
        %v777 = vunpack.c.l.b16 %v597
        %v778 = vunpack.c.h.b16 %v597
        %v779 = vunpack.c.l.b16 %v598
        %v780 = vunpack.c.h.b16 %v598
        %v781 = vunpack.c.l.b16 %v599
        %v782 = vunpack.c.h.b16 %v599
        %v783 = vunpack.c.l.b16 %v600
        %v784 = vunpack.c.h.b16 %v600
        %v785 = vunpack.c.l.b16 %v601
        %v786 = vunpack.c.h.b16 %v601
        %v787 = vunpack.c.l.b16 %v602
        %v788 = vunpack.c.h.b16 %v602
        %v789 = vunpack.c.l.b16 %v603
        %v790 = vunpack.c.h.b16 %v603
        %v791 = vunpack.c.l.b16 %v604
        %v792 = vunpack.c.h.b16 %v604
        %v793 = vunpack.c.l.b16 %v605
        %v794 = vunpack.c.h.b16 %v605
        %v795 = vunpack.c.l.b16 %v606
        %v796 = vunpack.c.h.b16 %v606
        %v797 = vunpack.c.l.b16 %v607
        %v798 = vunpack.c.h.b16 %v607
        %v799 = vunpack.c.l.b16 %v608
        %v800 = vunpack.c.h.b16 %v608
        %v801 = vpack.c.b16 %v681, %v673
        %v802 = vpack.c.b16 %v682, %v674
        %v803 = vpack.c.b16 %v683, %v675
        %v804 = vpack.c.b16 %v684, %v676
        %v805 = vpack.c.b16 %v685, %v677
        %v806 = vpack.c.b16 %v686, %v678
        %v807 = vpack.c.b16 %v687, %v679
        %v808 = vpack.c.b16 %v688, %v680
        %v809 = vpack.c.b16 %v697, %v689
        %v810 = vpack.c.b16 %v698, %v690
        %v811 = vpack.c.b16 %v699, %v691
        %v812 = vpack.c.b16 %v700, %v692
        %v813 = vpack.c.b16 %v701, %v693
        %v814 = vpack.c.b16 %v702, %v694
        %v815 = vpack.c.b16 %v703, %v695
        %v816 = vpack.c.b16 %v704, %v696
        %v817 = vpack.c.b16 %v713, %v705
        %v818 = vpack.c.b16 %v714, %v706
        %v819 = vpack.c.b16 %v715, %v707
        %v820 = vpack.c.b16 %v716, %v708
        %v821 = vpack.c.b16 %v717, %v709
        %v822 = vpack.c.b16 %v718, %v710
        %v823 = vpack.c.b16 %v719, %v711
        %v824 = vpack.c.b16 %v720, %v712
        %v825 = vpack.c.b16 %v729, %v721
        %v826 = vpack.c.b16 %v730, %v722
        %v827 = vpack.c.b16 %v731, %v723
        %v828 = vpack.c.b16 %v732, %v724
        %v829 = vpack.c.b16 %v733, %v725
        %v830 = vpack.c.b16 %v734, %v726
        %v831 = vpack.c.b16 %v735, %v727
        %v832 = vpack.c.b16 %v736, %v728
        %v833 = vpack.c.b16 %v745, %v737
        %v834 = vpack.c.b16 %v746, %v738
        %v835 = vpack.c.b16 %v747, %v739
        %v836 = vpack.c.b16 %v748, %v740
        %v837 = vpack.c.b16 %v749, %v741
        %v838 = vpack.c.b16 %v750, %v742
        %v839 = vpack.c.b16 %v751, %v743
        %v840 = vpack.c.b16 %v752, %v744
        %v841 = vpack.c.b16 %v761, %v753
        %v842 = vpack.c.b16 %v762, %v754
        %v843 = vpack.c.b16 %v763, %v755
        %v844 = vpack.c.b16 %v764, %v756
        %v845 = vpack.c.b16 %v765, %v757
        %v846 = vpack.c.b16 %v766, %v758
        %v847 = vpack.c.b16 %v767, %v759
        %v848 = vpack.c.b16 %v768, %v760
        %v849 = vpack.c.b16 %v777, %v769
        %v850 = vpack.c.b16 %v778, %v770
        %v851 = vpack.c.b16 %v779, %v771
        %v852 = vpack.c.b16 %v780, %v772
        %v853 = vpack.c.b16 %v781, %v773
        %v854 = vpack.c.b16 %v782, %v774
        %v855 = vpack.c.b16 %v783, %v775
        %v856 = vpack.c.b16 %v784, %v776
        %v857 = vpack.c.b16 %v793, %v785
        %v858 = vpack.c.b16 %v794, %v786
        %v859 = vpack.c.b16 %v795, %v787
        %v860 = vpack.c.b16 %v796, %v788
        %v861 = vpack.c.b16 %v797, %v789
        %v862 = vpack.c.b16 %v798, %v790
        %v863 = vpack.c.b16 %v799, %v791
        %v864 = vpack.c.b16 %v800, %v792
        %929 = vmatprep.subr.bf16.mxu0 %v802
        %930 = vmatpush1.bf16.msra.mxu0 %v801
        %931 = vmatprep.subr.bf16.mxu0 %v810
        %932 = vmatpush1.bf16.msra.mxu0 %v809
        %933 = vmatprep.subr.bf16.mxu0 %v818
        %934 = vmatpush1.bf16.msra.mxu0 %v817
        %935 = vmatprep.subr.bf16.mxu0 %v826
        %936 = vmatpush1.bf16.msra.mxu0 %v825
        %937 = vmatprep.subr.bf16.mxu0 %v834
        %938 = vmatpush1.bf16.msra.mxu0 %v833
        %939 = vmatprep.subr.bf16.mxu0 %v842
        %940 = vmatpush1.bf16.msra.mxu0 %v841
        %941 = vmatprep.subr.bf16.mxu0 %v850
        %942 = vmatpush1.bf16.msra.mxu0 %v849
        %943 = vmatprep.subr.bf16.mxu0 %v858
        %944 = vmatpush1.bf16.msra.mxu0 %v857
        %945 = vmatprep.subr.bf16.mxu0 0
        %946 = vmatpush1.bf16.msra.mxu0 0
        %947 = vmatprep.subr.bf16.mxu0 0
        %948 = vmatpush1.bf16.msra.mxu0 0
        %949 = vmatprep.subr.bf16.mxu0 0
        %950 = vmatpush1.bf16.msra.mxu0 0
        %951 = vmatprep.subr.bf16.mxu0 0
        %952 = vmatpush1.bf16.msra.mxu0 0
        %953 = vmatprep.subr.bf16.mxu0 0
        %954 = vmatpush1.bf16.msra.mxu0 0
        %955 = vmatprep.subr.bf16.mxu0 0
        %956 = vmatpush1.bf16.msra.mxu0 0
        %957 = vmatprep.subr.bf16.mxu0 0
        %958 = vmatpush1.bf16.msra.mxu0 0
        %959 = vmatprep.subr.bf16.mxu0 0
        %960 = vmatpush1.bf16.msra.mxu0 0
        %961 = vmatprep.mubr.bf16.mxu0 0
        %962 = vmatmul.mubr.bf16.gmra.mrb[0].mxu0 %v544
        %v963 = vpop.f32.mrb[0].mxu0
        %v964 = vadd.f32 0.0, %v963
        %v965 = vpop.f32.mrb[0].mxu0
        %v966 = vadd.f32 0.0, %v965
        %v967 = vpop.f32.mrb[0].mxu0
        %v968 = vadd.f32 0.0, %v967
        %v969 = vpop.f32.mrb[0].mxu0
        %v970 = vadd.f32 0.0, %v969
        %971 = vdwg.mxu0
        %972 = vmatprep.subr.bf16.mxu0 %v804
        %973 = vmatpush1.bf16.msra.mxu0 %v803
        %974 = vmatprep.subr.bf16.mxu0 %v812
        %975 = vmatpush1.bf16.msra.mxu0 %v811
        %976 = vmatprep.subr.bf16.mxu0 %v820
        %977 = vmatpush1.bf16.msra.mxu0 %v819
        %978 = vmatprep.subr.bf16.mxu0 %v828
        %979 = vmatpush1.bf16.msra.mxu0 %v827
        %980 = vmatprep.subr.bf16.mxu0 %v836
        %981 = vmatpush1.bf16.msra.mxu0 %v835
        %982 = vmatprep.subr.bf16.mxu0 %v844
        %983 = vmatpush1.bf16.msra.mxu0 %v843
        %984 = vmatprep.subr.bf16.mxu0 %v852
        %985 = vmatpush1.bf16.msra.mxu0 %v851
        %986 = vmatprep.subr.bf16.mxu0 %v860
        %987 = vmatpush1.bf16.msra.mxu0 %v859
        %988 = vmatprep.subr.bf16.mxu0 0
        %989 = vmatpush1.bf16.msra.mxu0 0
        %990 = vmatprep.subr.bf16.mxu0 0
        %991 = vmatpush1.bf16.msra.mxu0 0
        %992 = vmatprep.subr.bf16.mxu0 0
        %993 = vmatpush1.bf16.msra.mxu0 0
        %994 = vmatprep.subr.bf16.mxu0 0
        %995 = vmatpush1.bf16.msra.mxu0 0
        %996 = vmatprep.subr.bf16.mxu0 0
        %997 = vmatpush1.bf16.msra.mxu0 0
        %998 = vmatprep.subr.bf16.mxu0 0
        %999 = vmatpush1.bf16.msra.mxu0 0
        %1000 = vmatprep.subr.bf16.mxu0 0
        %1001 = vmatpush1.bf16.msra.mxu0 0
        %1002 = vmatprep.subr.bf16.mxu0 0
        %1003 = vmatpush1.bf16.msra.mxu0 0
        %1004 = vmatprep.mubr.bf16.mxu0 0
        %1005 = vmatmul.mubr.bf16.gmra.mrb[0].mxu0 %v544
        %v1006 = vpop.f32.mrb[0].mxu0
        %v1007 = vadd.f32 0.0, %v1006
        %v1008 = vpop.f32.mrb[0].mxu0
        %v1009 = vadd.f32 0.0, %v1008
        %v1010 = vpop.f32.mrb[0].mxu0
        %v1011 = vadd.f32 0.0, %v1010
        %v1012 = vpop.f32.mrb[0].mxu0
        %v1013 = vadd.f32 0.0, %v1012
        %1014 = vdwg.mxu0
        %1015 = vmatprep.subr.bf16.mxu0 %v806
        %1016 = vmatpush1.bf16.msra.mxu0 %v805
        %1017 = vmatprep.subr.bf16.mxu0 %v814
        %1018 = vmatpush1.bf16.msra.mxu0 %v813
        %1019 = vmatprep.subr.bf16.mxu0 %v822
        %1020 = vmatpush1.bf16.msra.mxu0 %v821
        %1021 = vmatprep.subr.bf16.mxu0 %v830
        %1022 = vmatpush1.bf16.msra.mxu0 %v829
        %1023 = vmatprep.subr.bf16.mxu0 %v838
        %1024 = vmatpush1.bf16.msra.mxu0 %v837
        %1025 = vmatprep.subr.bf16.mxu0 %v846
        %1026 = vmatpush1.bf16.msra.mxu0 %v845
        %1027 = vmatprep.subr.bf16.mxu0 %v854
        %1028 = vmatpush1.bf16.msra.mxu0 %v853
        %1029 = vmatprep.subr.bf16.mxu0 %v862
        %1030 = vmatpush1.bf16.msra.mxu0 %v861
        %1031 = vmatprep.subr.bf16.mxu0 0
        %1032 = vmatpush1.bf16.msra.mxu0 0
        %1033 = vmatprep.subr.bf16.mxu0 0
        %1034 = vmatpush1.bf16.msra.mxu0 0
        %1035 = vmatprep.subr.bf16.mxu0 0
        %1036 = vmatpush1.bf16.msra.mxu0 0
        %1037 = vmatprep.subr.bf16.mxu0 0
        %1038 = vmatpush1.bf16.msra.mxu0 0
        %1039 = vmatprep.subr.bf16.mxu0 0
        %1040 = vmatpush1.bf16.msra.mxu0 0
        %1041 = vmatprep.subr.bf16.mxu0 0
        %1042 = vmatpush1.bf16.msra.mxu0 0
        %1043 = vmatprep.subr.bf16.mxu0 0
        %1044 = vmatpush1.bf16.msra.mxu0 0
        %1045 = vmatprep.subr.bf16.mxu0 0
        %1046 = vmatpush1.bf16.msra.mxu0 0
        %1047 = vmatprep.mubr.bf16.mxu0 0
        %1048 = vmatmul.mubr.bf16.gmra.mrb[0].mxu0 %v544
        %v1049 = vpop.f32.mrb[0].mxu0
        %v1050 = vadd.f32 0.0, %v1049
        %v1051 = vpop.f32.mrb[0].mxu0
        %v1052 = vadd.f32 0.0, %v1051
        %v1053 = vpop.f32.mrb[0].mxu0
        %v1054 = vadd.f32 0.0, %v1053
        %v1055 = vpop.f32.mrb[0].mxu0
        %v1056 = vadd.f32 0.0, %v1055
        %1057 = vdwg.mxu0
        %1058 = vmatprep.subr.bf16.mxu0 %v808
        %1059 = vmatpush1.bf16.msra.mxu0 %v807
        %1060 = vmatprep.subr.bf16.mxu0 %v816
        %1061 = vmatpush1.bf16.msra.mxu0 %v815
        %1062 = vmatprep.subr.bf16.mxu0 %v824
        %1063 = vmatpush1.bf16.msra.mxu0 %v823
        %1064 = vmatprep.subr.bf16.mxu0 %v832
        %1065 = vmatpush1.bf16.msra.mxu0 %v831
        %1066 = vmatprep.subr.bf16.mxu0 %v840
        %1067 = vmatpush1.bf16.msra.mxu0 %v839
        %1068 = vmatprep.subr.bf16.mxu0 %v848
        %1069 = vmatpush1.bf16.msra.mxu0 %v847
        %1070 = vmatprep.subr.bf16.mxu0 %v856
        %1071 = vmatpush1.bf16.msra.mxu0 %v855
        %1072 = vmatprep.subr.bf16.mxu0 %v864
        %1073 = vmatpush1.bf16.msra.mxu0 %v863
        %1074 = vmatprep.subr.bf16.mxu0 0
        %1075 = vmatpush1.bf16.msra.mxu0 0
        %1076 = vmatprep.subr.bf16.mxu0 0
        %1077 = vmatpush1.bf16.msra.mxu0 0
        %1078 = vmatprep.subr.bf16.mxu0 0
        %1079 = vmatpush1.bf16.msra.mxu0 0
        %1080 = vmatprep.subr.bf16.mxu0 0
        %1081 = vmatpush1.bf16.msra.mxu0 0
        %1082 = vmatprep.subr.bf16.mxu0 0
        %1083 = vmatpush1.bf16.msra.mxu0 0
        %1084 = vmatprep.subr.bf16.mxu0 0
        %1085 = vmatpush1.bf16.msra.mxu0 0
        %1086 = vmatprep.subr.bf16.mxu0 0
        %1087 = vmatpush1.bf16.msra.mxu0 0
        %1088 = vmatprep.subr.bf16.mxu0 0
        %1089 = vmatpush1.bf16.msra.mxu0 0
        %1090 = vmatprep.mubr.bf16.mxu0 0
        %1091 = vmatmul.mubr.bf16.gmra.mrb[0].mxu0 %v544
        %v1092 = vpop.f32.mrb[0].mxu0
        %v1093 = vadd.f32 0.0, %v1092
        %v1094 = vpop.f32.mrb[0].mxu0
        %v1095 = vadd.f32 0.0, %v1094
        %v1096 = vpop.f32.mrb[0].mxu0
        %v1097 = vadd.f32 0.0, %v1096
        %v1098 = vpop.f32.mrb[0].mxu0
        %v1099 = vadd.f32 0.0, %v1098
        %1100 = vdwg.mxu0
        %v1101 = vld [vmem:[#allocation2] sm:$0xff]
        %v1102 = vmax.f32 %v964, %v968
        %v1103 = vrot.slane %v1102, 4
        %v1104 = vmax.f32 %v1102, %v1103
        %v1105 = vrot.slane %v1104, 2
        %v1106 = vmax.f32 %v1104, %v1105
        %v1107 = vrot.slane %v1106, 1
        %v1108 = vmax.f32 %v1106, %v1107
        %v1109 = vmax.f32 %v966, %v970
        %v1110 = vrot.slane %v1109, 4
        %v1111 = vmax.f32 %v1109, %v1110
        %v1112 = vrot.slane %v1111, 2
        %v1113 = vmax.f32 %v1111, %v1112
        %v1114 = vrot.slane %v1113, 1
        %v1115 = vmax.f32 %v1113, %v1114
        %v1116 = vmax.f32 %v1007, %v1011
        %v1117 = vrot.slane %v1116, 4
        %v1118 = vmax.f32 %v1116, %v1117
        %v1119 = vrot.slane %v1118, 2
        %v1120 = vmax.f32 %v1118, %v1119
        %v1121 = vrot.slane %v1120, 1
        %v1122 = vmax.f32 %v1120, %v1121
        %v1123 = vmax.f32 %v1009, %v1013
        %v1124 = vrot.slane %v1123, 4
        %v1125 = vmax.f32 %v1123, %v1124
        %v1126 = vrot.slane %v1125, 2
        %v1127 = vmax.f32 %v1125, %v1126
        %v1128 = vrot.slane %v1127, 1
        %v1129 = vmax.f32 %v1127, %v1128
        %v1130 = vmax.f32 %v1050, %v1054
        %v1131 = vrot.slane %v1130, 4
        %v1132 = vmax.f32 %v1130, %v1131
        %v1133 = vrot.slane %v1132, 2
        %v1134 = vmax.f32 %v1132, %v1133
        %v1135 = vrot.slane %v1134, 1
        %v1136 = vmax.f32 %v1134, %v1135
        %v1137 = vmax.f32 %v1052, %v1056
        %v1138 = vrot.slane %v1137, 4
        %v1139 = vmax.f32 %v1137, %v1138
        %v1140 = vrot.slane %v1139, 2
        %v1141 = vmax.f32 %v1139, %v1140
        %v1142 = vrot.slane %v1141, 1
        %v1143 = vmax.f32 %v1141, %v1142
        %v1144 = vmax.f32 %v1093, %v1097
        %v1145 = vrot.slane %v1144, 4
        %v1146 = vmax.f32 %v1144, %v1145
        %v1147 = vrot.slane %v1146, 2
        %v1148 = vmax.f32 %v1146, %v1147
        %v1149 = vrot.slane %v1148, 1
        %v1150 = vmax.f32 %v1148, %v1149
        %v1151 = vmax.f32 %v1095, %v1099
        %v1152 = vrot.slane %v1151, 4
        %v1153 = vmax.f32 %v1151, %v1152
        %v1154 = vrot.slane %v1153, 2
        %v1155 = vmax.f32 %v1153, %v1154
        %v1156 = vrot.slane %v1155, 1
        %v1157 = vmax.f32 %v1155, %v1156
        %v1166 = vcombine.low %v1108, %v1115
        %v1167 = vcombine.low %v1122, %v1129
        %v1168 = vcombine.low %v1136, %v1143
        %v1169 = vcombine.low %v1150, %v1157
        %v1171 = vunpack.c.l.s4 1966171168
        %v1172 = vunpack.c.0.s8 %v1171
        %v1173 = vlaneseq
        %v1174 = vshrl.u32 %v1173, 7
        %v1175 = vsub.s32 %v1172, %v1174
        %v1176 = vrot.slane %v1166, %v1175
        %v1178 = vunpack.c.l.s4 1966171168
        %v1179 = vunpack.c.0.s8 %v1178
        %v1180 = vlaneseq
        %v1181 = vshrl.u32 %v1180, 7
        %v1182 = vsub.s32 %v1179, %v1181
        %v1183 = vrot.slane %v1167, %v1182
        %v1185 = vunpack.c.l.s4 1966171168
        %v1186 = vunpack.c.0.s8 %v1185
        %v1187 = vlaneseq
        %v1188 = vshrl.u32 %v1187, 7
        %v1189 = vsub.s32 %v1186, %v1188
        %v1190 = vrot.slane %v1168, %v1189
        %v1192 = vunpack.c.l.s4 1966171168
        %v1193 = vunpack.c.0.s8 %v1192
        %v1194 = vlaneseq
        %v1195 = vshrl.u32 %v1194, 7
        %v1196 = vsub.s32 %v1193, %v1195
        %v1197 = vrot.slane %v1169, %v1196
        %v1198 = vcombine.low %v1176, %v1183
        %v1199 = vcombine.low %v1190, %v1197
        %v1201 = vunpack.c.l.s4 1966171168
        %v1202 = vunpack.c.0.s8 %v1201
        %v1203 = vlaneseq
        %v1204 = vshrl.u32 %v1203, 7
        %v1205 = vsub.s32 %v1202, %v1204
        %v1206 = vrot.slane %v1198, %v1205
        %v1208 = vunpack.c.l.s4 1966171168
        %v1209 = vunpack.c.0.s8 %v1208
        %v1210 = vlaneseq
        %v1211 = vshrl.u32 %v1210, 7
        %v1212 = vsub.s32 %v1209, %v1211
        %v1213 = vrot.slane %v1199, %v1212
        %v1214 = vcombine.low %v1206, %v1213
        %v1216 = vmax.f32 %v1101, %v1214
        %1217 = vst [vmem:[#allocation2] sm:$0xff] %v1216
        // Predicated region
        $region77: #{point_spatial_transformer.1} parent=47 // pred_check
          %p1218 = pneg %p386
        $region78: #{point_spatial_transformer.1} parent=47 // pred_check_branch
          %1220 = sbr.rel (%p1218) target = $region80
        $region79: #{point_spatial_transformer.1} parent=47 // pred_region
          %v1221 = vld [vmem:[#allocation2] sm:$0xff]
          %v1222 = vld [vmem:[#allocation11] sm:$0xff]
          %v1223 = vadd.f32 %v1221, %v1222
          %v1224 = vmax.f32 %v1223, 0.0
          %1225 = vst [vmem:[%s384] sm:$0xff] %v1224
        $region80: #{point_spatial_transformer.1} parent=47 // pred_fallthru
          _
        %p1226 = scmp.lt.s32.totalorder %s26, 1
        %s1227 = scalar_select %p1226, %s26, 1
        %s1228 = smul.addr %s1227, 8
        %s1229 = scalar_lea.vmem %s7, %s1228
        // Predicated region
        $region81: #{point_spatial_transformer.1} parent=47 // pred_check
          %p1230 = pneg %p206
        $region82: #{point_spatial_transformer.1} parent=47 // pred_check_branch
          %1232 = sbr.rel (%p1230) target = $region84
        $region83: #{point_spatial_transformer.1} parent=47 // pred_region
          _
        $region84: #{point_spatial_transformer.1} parent=47 // pred_fallthru
          _
      $region48: #{point_spatial_transformer.1} parent=5 // pred_fallthru
        _
      %p1233 = scmp.le.s32.totalorder 2, %s17
      // Predicated region
      $region85: #{point_spatial_transformer.1} parent=5 // pred_check
        %p1234 = pneg %p1233
      $region86: #{point_spatial_transformer.1} parent=5 // pred_check_branch
        %1236 = sbr.rel (%p1234) target = $region88
      $region87: #{point_spatial_transformer.1} parent=5 // pred_region
        %s1237 = ssub.s32 %s17, 2
        // Predicated region
        $region89: #{point_spatial_transformer.1} parent=87 // pred_check
          %p1238 = pneg %p212
        $region90: #{point_spatial_transformer.1} parent=87 // pred_check_branch
          %1240 = sbr.rel (%p1238) target = $region92
        $region91: #{point_spatial_transformer.1} parent=87 // pred_region
          %p1241 = scmp.lt.s32.totalorder %s28, 1
          %s1242 = scalar_select %p1241, %s28, 1
          %s1243 = smul.addr %s1242, 8
          %s1244 = scalar_lea.vmem %s7, %s1243
        $region92: #{point_spatial_transformer.1} parent=87 // pred_fallthru
          _
      $region88: #{point_spatial_transformer.1} parent=5 // pred_fallthru
        _
    $region6: #{point_spatial_transformer.1} parent=1 // loop_footer
      %s21 = sadd.s32 1, %s17
    $region7: #{point_spatial_transformer.1} parent=1 // loop_footer_branch
      %16 = sbr.rel target = $region3
    $region8: #{point_spatial_transformer.1} parent=1 // loop_exit
      _
    %1245 = vsyncpa [#allocation4], 1
    %s1246 = scalar_lea.sflag [#allocation4], 1
    %1247 = vsyncpa %s1246, 1
    %1248 = vsyncpa [#allocation6], 1
    %1249 = vsyncpa [#allocation9], 1
    %1250 = vsyncpa [#allocation12], 1

</llo_original>
